<compile_context>
chip_gen: v5e
topology: v5e:2x2
jax: 0.10.0
libtpu: 0.0.40
codegen_flags: <defaults>
</compile_context>

<pallas_src>
import functools

import jax
import jax.numpy as jnp
from jax import lax
from jax.experimental import pallas as pl
from jax.experimental.pallas import tpu as pltpu

BN_EPS = 1e-5


def _fused_linear01(x_tile, w01t, b01):
    """h1[f, b] = sum_k W01^T[f, k] * x[b, k] + b01[f]  ->  (8, TB), feature-major.

    Contracting both minor dims (q @ k^T style) lets the MXU consume x in its
    natural batch-major layout -- no wrapper transpose, no XLU transpose.
    """
    h1 = lax.dot_general(w01t, x_tile, (((1,), (1,)), ((), ())),
                         preferred_element_type=jnp.float32)
    return h1 + b01


def mlp_kernel_single(x_ref, w01t_ref, b01_ref, g1_ref, be1_ref, w3t_ref, b3_ref,
                      o_ref):
    """Whole batch in one block: one grid step, exact (two-pass) BatchNorm."""
    h1 = _fused_linear01(x_ref[...], w01t_ref[...], b01_ref[...])      # (8, B)
    mean = jnp.mean(h1, axis=1, keepdims=True)                         # (8, 1)
    var = jnp.mean((h1 - mean) ** 2, axis=1, keepdims=True)            # centered
    scale = g1_ref[...] * lax.rsqrt(var + BN_EPS)
    h = jnp.maximum((h1 - mean) * scale + be1_ref[...], 0.0)
    out = jnp.dot(w3t_ref[...], h, preferred_element_type=jnp.float32) + b3_ref[...]
    o_ref[...] = out.astype(o_ref.dtype)


def mlp_kernel_tiled(x_ref, w01t_ref, b01_ref, g1_ref, be1_ref, w3t_ref, b3_ref,
                     o_ref, h1_cache, sum_ref, sumsq_ref, scale_ref, shift_ref,
                     *, batch, tile_b):
    p = pl.program_id(0)   # 0: fused linear + BN stats; 1: normalize + fc3 + write
    t = pl.program_id(1)   # batch-tile index

    @pl.when(jnp.logical_and(p == 0, t == 0))
    def _init():
        sum_ref[...] = jnp.zeros_like(sum_ref)
        sumsq_ref[...] = jnp.zeros_like(sumsq_ref)

    @pl.when(p == 0)
    def _stats():
        h1 = _fused_linear01(x_ref[...], w01t_ref[...], b01_ref[...])  # (8, TB)
        # Resident VMEM cache: phase 1 reuses it, so x is streamed from HBM once
        # and the fused matmul is never recomputed.
        h1_cache[t] = h1
        col = lax.broadcasted_iota(jnp.int32, (1, tile_b), 1) + t * tile_b
        valid = col < batch                      # mask padded batch lanes from stats
        h1m = jnp.where(valid, h1, 0.0)
        # Shifted sum-of-squares (pivot = b01 ~ per-feature mean) so the cross-tile
        # single-pass variance does not cancel catastrophically.
        d = jnp.where(valid, h1 - b01_ref[...], 0.0)
        sum_ref[...] += jnp.sum(h1m, axis=1, keepdims=True)
        sumsq_ref[...] += jnp.sum(d * d, axis=1, keepdims=True)
        # NOTE: no o_ref write in phase 0 -- the out index_map keeps every phase-0
        # step on block (0, 0), so no phase-0 tile is ever written back to HBM.

    @pl.when(p == 1)
    def _project():
        @pl.when(t == 0)
        def _finalize_stats():                   # hoisted: computed once per batch
            inv_n = jnp.float32(1.0 / batch)
            mean = sum_ref[...] * inv_n
            dmean = mean - b01_ref[...]
            var = jnp.maximum(sumsq_ref[...] * inv_n - dmean * dmean, 0.0)
            scale = g1_ref[...] * lax.rsqrt(var + BN_EPS)
            scale_ref[...] = scale
            shift_ref[...] = be1_ref[...] - mean * scale

        h1 = h1_cache[t]                         # from VMEM -- no HBM refetch
        h = jnp.maximum(h1 * scale_ref[...] + shift_ref[...], 0.0)
        out = jnp.dot(w3t_ref[...], h, preferred_element_type=jnp.float32) + b3_ref[...]
        o_ref[...] = out.astype(o_ref.dtype)


def mlp_forward(x, params, *, tile_b=8192):
    """x: (B, 16) float32 (natural batch-major). Returns {'C','lamb','observe'}: (B,)."""
    B, F = x.shape
    assert F == 16
    x = x.astype(jnp.float32)

    # Exact fusion of fc0 and fc1 (no nonlinearity in between): one Linear(16->8).
    w01 = params["w0"] @ params["w1"]                   # (16, 8)
    b01 = params["b0"] @ params["w1"] + params["b1"]    # (1, 8)

    w01t = w01.T                                        # (8, 16)
    b01c = b01.reshape(8, 1)
    g1 = params["bn1_gamma"].reshape(8, 1)
    be1 = params["bn1_beta"].reshape(8, 1)
    # fc3 row-padded 3 -> 8 (zeros) so output blocks are full-sublane and unmasked;
    # the heads are rows 0..2 of the result.
    w3t = jnp.pad(params["w3"].T, ((0, 5), (0, 0)))            # (8, 8)
    b3c = jnp.pad(params["b3"].reshape(3, 1), ((0, 5), (0, 0)))  # (8, 1)

    small_specs = [
        pl.BlockSpec((8, 16), lambda *_: (0, 0)),   # W01^T (resident)
        pl.BlockSpec((8, 1), lambda *_: (0, 0)),    # b01
        pl.BlockSpec((8, 1), lambda *_: (0, 0)),    # bn1 gamma
        pl.BlockSpec((8, 1), lambda *_: (0, 0)),    # bn1 beta
        pl.BlockSpec((8, 8), lambda *_: (0, 0)),    # W3^T (row-padded)
        pl.BlockSpec((8, 1), lambda *_: (0, 0)),    # b3   (row-padded)
    ]

    if B <= tile_b:
        # ---- single-tile fast path: one grid step, exact two-pass BN ----
        out = pl.pallas_call(
            mlp_kernel_single,
            out_shape=jax.ShapeDtypeStruct((8, B), jnp.float32),
            grid_spec=pltpu.PrefetchScalarGridSpec(
                num_scalar_prefetch=0,
                grid=(1,),
                in_specs=[pl.BlockSpec((B, 16), lambda *_: (0, 0))] + small_specs,
                out_specs=pl.BlockSpec((8, B), lambda *_: (0, 0)),
            ),
        )(x, w01t, b01c, g1, be1, w3t, b3c)
        return {"C": out[0], "lamb": out[1], "observe": out[2]}

    # ---- tiled two-phase path ----
    TB = tile_b
    assert TB % 128 == 0, "tile_b must be a multiple of 128 (output lane tiling)"
    n_tiles = pl.cdiv(B, TB)
    B_pad = n_tiles * TB
    if B_pad != B:
        # TODO(synk): have the producer emit a lane-aligned batch so this pad pass
        # disappears for large ragged B.
        x = jnp.pad(x, ((0, B_pad - B), (0, 0)))

    # VMEM budget: x blocks pad lanes 16->128 (512 B/row/buffer), out blocks are
    # 32 B/row/buffer, the resident h1 cache is 32 B/row.
    vmem_need = (2 * TB * 128 * 4) + (2 * 8 * TB * 4) + (8 * B_pad * 4) + (2 << 20)
    # TODO(synk): spill the h1 cache to HBM (or fall back to recomputing h1 in
    # phase 1) for batches beyond ~1.5M rows; shard across v7x's 2 TensorCores.
    assert vmem_need <= (48 << 20), (
        "h1 cache + tiles exceed the 48 MiB VMEM budget (v7x physical is 64 MiB); "
        "lower tile_b or shard the batch.")

    last = n_tiles - 1
    kernel = functools.partial(mlp_kernel_tiled, batch=B, tile_b=TB)
    out = pl.pallas_call(
        kernel,
        out_shape=jax.ShapeDtypeStruct((8, B_pad), jnp.float32),
        grid_spec=pltpu.PrefetchScalarGridSpec(
            num_scalar_prefetch=0,
            grid=(2, n_tiles),                          # (phase, batch tile)
            in_specs=[
                # Phase 1 maps every step onto the last phase-0 block, so Pallas
                # elides all phase-1 x DMAs (h1 is served from the VMEM cache).
                pl.BlockSpec((TB, 16), lambda p, t: (t * (1 - p) + last * p, 0)),
            ] + small_specs,
            # Phase 0 never writes output; keeping all its steps on block (0, 0)
            # elides the per-tile phase-0 writebacks (output hits HBM exactly once).
            out_specs=pl.BlockSpec((8, TB), lambda p, t: (0, t * p)),
            scratch_shapes=[
                pltpu.VMEM((n_tiles, 8, TB), jnp.float32),  # resident h1 cache
                pltpu.VMEM((8, 1), jnp.float32),            # BN sum
                pltpu.VMEM((8, 1), jnp.float32),            # BN shifted sum-of-squares
                pltpu.VMEM((8, 1), jnp.float32),            # hoisted BN scale
                pltpu.VMEM((8, 1), jnp.float32),            # hoisted BN shift
            ],
        ),
        # Both axes serial: phase ordering + full-batch BN stats couple every tile.
        # TODO(synk): on v7x, split the tile axis across the 2 TensorCores with
        # per-core partial BN sums combined via CMEM before the normalize phase.
        compiler_params=pltpu.CompilerParams(
            dimension_semantics=("arbitrary", "arbitrary"),
            vmem_limit_bytes=int(max(vmem_need, 32 << 20)),
        ),
    )(x, w01t, b01c, g1, be1, w3t, b3c)

    out = out[:, :B]   # drop padded lanes; heads are contiguous rows
    return {"C": out[0], "lamb": out[1], "observe": out[2]}


def mlp_reference(x, params):
    """Pure-JAX reference mirroring the PyTorch forward (unfused, two-pass BN)."""
    h = x @ params["w0"] + params["b0"]
    h = h @ params["w1"] + params["b1"]
    mean = jnp.mean(h, axis=0, keepdims=True)
    var = jnp.mean((h - mean) ** 2, axis=0, keepdims=True)
    h = (h - mean) * lax.rsqrt(var + BN_EPS) * params["bn1_gamma"] + params["bn1_beta"]
    h = jnp.maximum(h, 0.0)
    out = h @ params["w3"] + params["b3"]
    return {"C": out[:, 0], "lamb": out[:, 1], "observe": out[:, 2]}


def init_params(key):
    """Deterministic init mimicking PyTorch Linear default (U[-1/sqrt(fan_in), +])."""
    def linear(k, fan_in, fan_out):
        kw, kb = jax.random.split(k)
        bound = 1.0 / jnp.sqrt(float(fan_in))
        # stored as (in, out) so composition is x @ W (== x @ W_torch.T)
        w = jax.random.uniform(kw, (fan_in, fan_out), jnp.float32, -bound, bound)
        b = jax.random.uniform(kb, (1, fan_out), jnp.float32, -bound, bound)
        return w, b

    k0, k1, k3 = jax.random.split(key, 3)
    w0, b0 = linear(k0, 16, 16)
    w1, b1 = linear(k1, 16, 8)
    w3, b3 = linear(k3, 8, 3)
    return {
        "w0": w0, "b0": b0,
        "w1": w1, "b1": b1,
        "bn1_gamma": jnp.ones((1, 8), jnp.float32),
        "bn1_beta": jnp.zeros((1, 8), jnp.float32),
        "w3": w3, "b3": b3,
    }


if __name__ == "__main__":
    key = jax.random.PRNGKey(0)
    kx, kp, kx2 = jax.random.split(key, 3)
    params = init_params(kp)

    # Small batch consistent with the module (feature_dim=16): single-tile path.
    x_small = jax.random.normal(kx, (8, 16), jnp.float32)
    out = mlp_forward(x_small, params)
    jax.block_until_ready(out)
    ref = mlp_reference(x_small, params)
    for name in ("C", "lamb", "observe"):
        assert out[name].shape == (8,)
        assert jnp.allclose(out[name], ref[name], atol=1e-3, rtol=1e-3), name

    # Exercise the tiled two-phase path (multiple tiles + ragged-tail masking)
    # with a small tile size so the test stays tiny.
    x_big = jax.random.normal(kx2, (300, 16), jnp.float32)
    out2 = mlp_forward(x_big, params, tile_b=128)
    jax.block_until_ready(out2)
    ref2 = mlp_reference(x_big, params)
    for name in ("C", "lamb", "observe"):
        assert out2[name].shape == (300,)
        assert jnp.allclose(out2[name], ref2[name], atol=1e-3, rtol=1e-3), name

    print("KERNEL_OK")
</pallas_src>

<mosaic_0001>
module attributes {stable_mosaic.version = 11 : i64} {
  func.func @mlp_kernel_single(%arg0: i32, %arg1: memref<8x16xf32, #tpu.memory_space<vmem>>, %arg2: memref<8x16xf32, #tpu.memory_space<vmem>>, %arg3: memref<8x1xf32, #tpu.memory_space<vmem>>, %arg4: memref<8x1xf32, #tpu.memory_space<vmem>>, %arg5: memref<8x1xf32, #tpu.memory_space<vmem>>, %arg6: memref<8x8xf32, #tpu.memory_space<vmem>>, %arg7: memref<8x1xf32, #tpu.memory_space<vmem>>, %arg8: memref<8x8xf32, #tpu.memory_space<vmem>>) attributes {dimension_semantics = [#tpu.dimension_semantics<arbitrary>], iteration_bounds = array<i64: 1>, scalar_prefetch = 0 : i64, scratch_operands = 0 : i64, tpu.core_type = #tpu.core_type<tc>, window_params = [{pipeline_mode = #tpu.pipeline_mode<synchronous>, transform_indices = @transform_0, window_bounds = array<i64: 8, 16>}, {pipeline_mode = #tpu.pipeline_mode<synchronous>, transform_indices = @transform_1, window_bounds = array<i64: 8, 16>}, {pipeline_mode = #tpu.pipeline_mode<synchronous>, transform_indices = @transform_2, window_bounds = array<i64: 8, 1>}, {pipeline_mode = #tpu.pipeline_mode<synchronous>, transform_indices = @transform_3, window_bounds = array<i64: 8, 1>}, {pipeline_mode = #tpu.pipeline_mode<synchronous>, transform_indices = @transform_4, window_bounds = array<i64: 8, 1>}, {pipeline_mode = #tpu.pipeline_mode<synchronous>, transform_indices = @transform_5, window_bounds = array<i64: 8, 8>}, {pipeline_mode = #tpu.pipeline_mode<synchronous>, transform_indices = @transform_6, window_bounds = array<i64: 8, 1>}, {pipeline_mode = #tpu.pipeline_mode<synchronous>, transform_indices = @transform_7, window_bounds = array<i64: 8, 8>}]} {
    %c0 = arith.constant 0 : index
    %c0_0 = arith.constant 0 : index
    %0 = vector.load %arg1[%c0, %c0_0] : memref<8x16xf32, #tpu.memory_space<vmem>>, vector<8x16xf32>
    %c0_1 = arith.constant 0 : index
    %c0_2 = arith.constant 0 : index
    %1 = vector.load %arg2[%c0_1, %c0_2] : memref<8x16xf32, #tpu.memory_space<vmem>>, vector<8x16xf32>
    %c0_3 = arith.constant 0 : index
    %c0_4 = arith.constant 0 : index
    %2 = vector.load %arg3[%c0_3, %c0_4] : memref<8x1xf32, #tpu.memory_space<vmem>>, vector<8x1xf32>
    %cst = arith.constant dense<0.000000e+00> : vector<8x8xf32>
    %3 = tpu.matmul %1, %0, %cst {dimension_numbers = #tpu.dot_dimension_numbers<[1], [1], [0], [0], [0, 0, 1, 0], [], []>} : vector<8x16xf32>, vector<8x16xf32>, vector<8x8xf32> -> vector<8x8xf32>
    %4 = vector.broadcast %2 : vector<8x1xf32> to vector<8x8xf32>
    %5 = arith.addf %3, %4 : vector<8x8xf32>
    %cst_5 = arith.constant dense<0.000000e+00> : vector<8xf32>
    %6 = vector.multi_reduction <add>, %5, %cst_5 [1] : vector<8x8xf32> to vector<8xf32>
    %7 = vector.shape_cast %6 : vector<8xf32> to vector<8x1xf32>
    %cst_6 = arith.constant 8.000000e+00 : f32
    %8 = vector.broadcast %cst_6 : f32 to vector<8x1xf32>
    %9 = arith.divf %7, %8 : vector<8x1xf32>
    %10 = vector.broadcast %9 : vector<8x1xf32> to vector<8x8xf32>
    %11 = arith.subf %5, %10 : vector<8x8xf32>
    %12 = arith.mulf %11, %11 : vector<8x8xf32>
    %cst_7 = arith.constant dense<0.000000e+00> : vector<8xf32>
    %13 = vector.multi_reduction <add>, %12, %cst_7 [1] : vector<8x8xf32> to vector<8xf32>
    %14 = vector.shape_cast %13 : vector<8xf32> to vector<8x1xf32>
    %cst_8 = arith.constant 8.000000e+00 : f32
    %15 = vector.broadcast %cst_8 : f32 to vector<8x1xf32>
    %16 = arith.divf %14, %15 : vector<8x1xf32>
    %c0_9 = arith.constant 0 : index
    %c0_10 = arith.constant 0 : index
    %17 = vector.load %arg4[%c0_9, %c0_10] : memref<8x1xf32, #tpu.memory_space<vmem>>, vector<8x1xf32>
    %cst_11 = arith.constant 9.99999974E-6 : f32
    %18 = vector.broadcast %cst_11 : f32 to vector<8x1xf32>
    %19 = arith.addf %16, %18 : vector<8x1xf32>
    %20 = math.rsqrt %19 : vector<8x1xf32>
    %21 = arith.mulf %17, %20 : vector<8x1xf32>
    %22 = vector.broadcast %9 : vector<8x1xf32> to vector<8x8xf32>
    %23 = arith.subf %5, %22 : vector<8x8xf32>
    %24 = vector.broadcast %21 : vector<8x1xf32> to vector<8x8xf32>
    %25 = arith.mulf %23, %24 : vector<8x8xf32>
    %c0_12 = arith.constant 0 : index
    %c0_13 = arith.constant 0 : index
    %26 = vector.load %arg5[%c0_12, %c0_13] : memref<8x1xf32, #tpu.memory_space<vmem>>, vector<8x1xf32>
    %27 = vector.broadcast %26 : vector<8x1xf32> to vector<8x8xf32>
    %28 = arith.addf %25, %27 : vector<8x8xf32>
    %cst_14 = arith.constant 0.000000e+00 : f32
    %29 = vector.broadcast %cst_14 : f32 to vector<8x8xf32>
    %30 = arith.maximumf %28, %29 : vector<8x8xf32>
    %c0_15 = arith.constant 0 : index
    %c0_16 = arith.constant 0 : index
    %31 = vector.load %arg6[%c0_15, %c0_16] : memref<8x8xf32, #tpu.memory_space<vmem>>, vector<8x8xf32>
    %cst_17 = arith.constant dense<0.000000e+00> : vector<8x8xf32>
    %32 = tpu.matmul %31, %30, %cst_17 {dimension_numbers = #tpu.dot_dimension_numbers<[1], [0], [0], [1], [0, 0, 1, 1], [], []>} : vector<8x8xf32>, vector<8x8xf32>, vector<8x8xf32> -> vector<8x8xf32>
    %c0_18 = arith.constant 0 : index
    %c0_19 = arith.constant 0 : index
    %33 = vector.load %arg7[%c0_18, %c0_19] : memref<8x1xf32, #tpu.memory_space<vmem>>, vector<8x1xf32>
    %34 = vector.broadcast %33 : vector<8x1xf32> to vector<8x8xf32>
    %35 = arith.addf %32, %34 : vector<8x8xf32>
    %c0_20 = arith.constant 0 : index
    %c0_21 = arith.constant 0 : index
    %36 = vector.load %arg8[%c0_20, %c0_21] : memref<8x8xf32, #tpu.memory_space<vmem>>, vector<8x8xf32>
    tpu.vector_store %arg8[%c0_20, %c0_21], %35 {strides = array<i32>} : memref<8x8xf32, #tpu.memory_space<vmem>>, vector<8x8xf32>,
    return
  }
  func.func @transform_0(%arg0: i32) -> (i32, i32) {
    %c0_i32 = arith.constant 0 : i32
    %c0_i32_0 = arith.constant 0 : i32
    %c0_i32_1 = arith.constant 0 : i32
    return %c0_i32, %c0_i32_0 : i32, i32
  }
  func.func @transform_1(%arg0: i32) -> (i32, i32) {
    %c0_i32 = arith.constant 0 : i32
    %c0_i32_0 = arith.constant 0 : i32
    %c0_i32_1 = arith.constant 0 : i32
    return %c0_i32, %c0_i32_0 : i32, i32
  }
  func.func @transform_2(%arg0: i32) -> (i32, i32) {
    %c0_i32 = arith.constant 0 : i32
    %c0_i32_0 = arith.constant 0 : i32
    %c0_i32_1 = arith.constant 0 : i32
    return %c0_i32, %c0_i32_0 : i32, i32
  }
  func.func @transform_3(%arg0: i32) -> (i32, i32) {
    %c0_i32 = arith.constant 0 : i32
    %c0_i32_0 = arith.constant 0 : i32
    %c0_i32_1 = arith.constant 0 : i32
    return %c0_i32, %c0_i32_0 : i32, i32
  }
  func.func @transform_4(%arg0: i32) -> (i32, i32) {
    %c0_i32 = arith.constant 0 : i32
    %c0_i32_0 = arith.constant 0 : i32
    %c0_i32_1 = arith.constant 0 : i32
    return %c0_i32, %c0_i32_0 : i32, i32
  }
  func.func @transform_5(%arg0: i32) -> (i32, i32) {
    %c0_i32 = arith.constant 0 : i32
    %c0_i32_0 = arith.constant 0 : i32
    %c0_i32_1 = arith.constant 0 : i32
    return %c0_i32, %c0_i32_0 : i32, i32
  }
  func.func @transform_6(%arg0: i32) -> (i32, i32) {
    %c0_i32 = arith.constant 0 : i32
    %c0_i32_0 = arith.constant 0 : i32
    %c0_i32_1 = arith.constant 0 : i32
    return %c0_i32, %c0_i32_0 : i32, i32
  }
  func.func @transform_7(%arg0: i32) -> (i32, i32) {
    %c0_i32 = arith.constant 0 : i32
    %c0_i32_0 = arith.constant 0 : i32
    %c0_i32_1 = arith.constant 0 : i32
    return %c0_i32, %c0_i32_0 : i32, i32
  }
}

</mosaic_0001>

<llo_original>
// kernel: tpu_custom_call.1
$region0: #{tpu_custom_call.1}
  #allocation0 [shape = 'u32[]', space=smem, size = 0x4, offset = 0x4, fixed_abs, tag = 'smem constant byte address 0x4 - core index']
  #allocation1 [shape = 'u32[72,128]{1,0:T(1,128)}', space=vmem, size = 0x9000, scoped, tag = 'internal scratch']
  %s0 = inlined_call_operand.vmem [shape: f32[8,16], index: 0, kind: input, shape index: {}]
  %s1 = inlined_call_operand.vmem [shape: f32[8,16], index: 1, kind: input, shape index: {}]
  %s2 = inlined_call_operand.vmem [shape: f32[8,1], index: 2, kind: input, shape index: {}]
  %s3 = inlined_call_operand.vmem [shape: f32[8,1], index: 3, kind: input, shape index: {}]
  %s4 = inlined_call_operand.vmem [shape: f32[8,1], index: 4, kind: input, shape index: {}]
  %s5 = inlined_call_operand.vmem [shape: f32[8,8], index: 5, kind: input, shape index: {}]
  %s6 = inlined_call_operand.vmem [shape: f32[8,1], index: 6, kind: input, shape index: {}]
  %s7 = inlined_call_operand.hbm [shape: f32[8,8], index: 7, kind: output, shape index: {}]
  %s8 = sld [smem:[#allocation0]]
  $region38: #{tpu_custom_call.1} parent=0
    _
  %s10 = ssub.s32 1, %s8
  %s11 = scalar_select 0, %s10, %s8
  $region1: #{tpu_custom_call.1} parent=0
    #allocation2 [shape = 'u8[4096]{0}', space=vmem, size = 0x1000, scoped, tag = 'output window, operand 0, single buffered']
    #allocation3 [shape = 's32[1]{0}', space=sflag, size = 0x4, scoped, tag = 'scoped memory for tpu_custom_call.1']
    %12 = vsyncpa [#allocation3], 0
    // Predicated region
    $region2: #{tpu_custom_call.1} parent=1 // pred_check
      _
    $region3: #{tpu_custom_call.1} parent=1 // pred_check_branch
      %14 = sbr.rel (0) target = $region5
    $region4: #{tpu_custom_call.1} parent=1 // pred_region
      _
    $region5: #{tpu_custom_call.1} parent=1 // pred_fallthru
      _
    // Predicated region
    $region6: #{tpu_custom_call.1} parent=1 // pred_check
      _
    $region7: #{tpu_custom_call.1} parent=1 // pred_check_branch
      %16 = sbr.rel (0) target = $region9
    $region8: #{tpu_custom_call.1} parent=1 // pred_region
      _
    $region9: #{tpu_custom_call.1} parent=1 // pred_fallthru
      _
    // Predicated region
    $region10: #{tpu_custom_call.1} parent=1 // pred_check
      _
    $region11: #{tpu_custom_call.1} parent=1 // pred_check_branch
      %18 = sbr.rel (0) target = $region13
    $region12: #{tpu_custom_call.1} parent=1 // pred_region
      _
    $region13: #{tpu_custom_call.1} parent=1 // pred_fallthru
      _
    // Predicated region
    $region14: #{tpu_custom_call.1} parent=1 // pred_check
      _
    $region15: #{tpu_custom_call.1} parent=1 // pred_check_branch
      %20 = sbr.rel (0) target = $region17
    $region16: #{tpu_custom_call.1} parent=1 // pred_region
      _
    $region17: #{tpu_custom_call.1} parent=1 // pred_fallthru
      _
    // Predicated region
    $region18: #{tpu_custom_call.1} parent=1 // pred_check
      _
    $region19: #{tpu_custom_call.1} parent=1 // pred_check_branch
      %22 = sbr.rel (0) target = $region21
    $region20: #{tpu_custom_call.1} parent=1 // pred_region
      _
    $region21: #{tpu_custom_call.1} parent=1 // pred_fallthru
      _
    // Predicated region
    $region22: #{tpu_custom_call.1} parent=1 // pred_check
      _
    $region23: #{tpu_custom_call.1} parent=1 // pred_check_branch
      %24 = sbr.rel (0) target = $region25
    $region24: #{tpu_custom_call.1} parent=1 // pred_region
      _
    $region25: #{tpu_custom_call.1} parent=1 // pred_fallthru
      _
    // Predicated region
    $region26: #{tpu_custom_call.1} parent=1 // pred_check
      _
    $region27: #{tpu_custom_call.1} parent=1 // pred_check_branch
      %26 = sbr.rel (0) target = $region29
    $region28: #{tpu_custom_call.1} parent=1 // pred_region
      _
    $region29: #{tpu_custom_call.1} parent=1 // pred_fallthru
      _
    %v27 = vld [vmem:[%s0] sm:$0xff]
    %v28 = vld [vmem:[%s1] sm:$0xff]
    %v29 = vld [vmem:[%s2] sm:$0xff]
    %31 = vset.pattern.permute.xlu0 0
    %32 = vperm.xlu0 %31, %v29
    %v33 = vpop.permute.xlu0 %32
    %vm35 = vcmask 130048
    %v37 = vsel %vm35, %v28, 0
    %v40 = vsel %vm35, %v27, 0
    %42 = vmatpush.xpose.msra.mxu0 0.0
    %43 = vmatpush.xpose.msra.mxu0 0.0
    %44 = vmatpush.xpose.msra.mxu0 0.0
    %45 = vmatpush.xpose.msra.mxu0 0.0
    %46 = vmatpush.xpose.msra.mxu0 0.0
    %47 = vmatpush.xpose.msra.mxu0 0.0
    %48 = vmatpush.xpose.msra.mxu0 0.0
    %49 = vmatpush.xpose.msra.mxu0 0.0
    %50 = vmatpush.xpose.msra.mxu0 0.0
    %51 = vmatpush.xpose.msra.mxu0 0.0
    %52 = vmatpush.xpose.msra.mxu0 0.0
    %53 = vmatpush.xpose.msra.mxu0 0.0
    %54 = vmatpush.xpose.msra.mxu0 0.0
    %55 = vmatpush.xpose.msra.mxu0 0.0
    %56 = vmatpush.xpose.msra.mxu0 0.0
    %57 = vmatpush.xpose.msra.mxu0 %v40
    %58 = vmatmul.f32.gmra.mxu0 %v37
    %v59 = vpop.f32.mrf.mxu0
    %v60 = vadd.f32 %v33, %v59
    %61 = vdwg.mxu0
    %vm62 = vcmask 64512
    %v63 = vsel %vm62, %v60, 0.0
    %64 = vadd.xlane.f32.xlu0 %v63
    %v65 = vpop.xlane.xlu0 %64
    %v66 = vrcp.pop 8.0
    %v67 = vmul.f32 8.0, %v66
    %v68 = vsub.f32 1.0, %v67
    %v69 = vmul.f32 %v66, %v68
    %v70 = vadd.f32 %v66, %v69
    %vm71 = vweird.f32 %v66
    %v72 = vsel %vm71, %v66, %v70
    %v73 = vmul.f32 %v65, %v72
    %v74 = vsub.f32 %v60, %v73
    %v75 = vmul.f32 %v74, %v74
    %v76 = vsel %vm62, %v75, 0.0
    %77 = vadd.xlane.f32.xlu0 %v76
    %v78 = vpop.xlane.xlu0 %77
    %v79 = vmul.f32 %v78, %v72
    %v80 = vld [vmem:[%s3] sm:$0xff]
    %v81 = vadd.f32 %v79, 1e-05
    %v82 = vrsqrt.pop %v81
    %v83 = vmul.f32 %v82, %v81
    %v84 = vmul.f32 %v83, %v82
    %v85 = vmul.f32 0.5, %v84
    %v86 = vsub.f32 1.5, %v85
    %v87 = vmul.f32 %v82, %v86
    %vm88 = vweird.f32 %v81
    %vm89 = vweird.f32 %v82
    %vm90 = vmor %vm88, %vm89
    %v91 = vsel %vm90, %v82, %v87
    %v92 = vmul.f32 %v80, %v91
    %94 = vset.pattern.permute.xlu0 0
    %95 = vperm.xlu0 %94, %v92
    %v96 = vpop.permute.xlu0 %95
    %v98 = vmul.f32 %v74, %v96
    %v99 = vld [vmem:[%s4] sm:$0xff]
    %101 = vset.pattern.permute.xlu0 0
    %102 = vperm.xlu0 %101, %v99
    %v103 = vpop.permute.xlu0 %102
    %v105 = vadd.f32 %v98, %v103
    %v106 = vmax.f32 %v105, 0.0
    %v107 = vld [vmem:[%s5] sm:$0xff]
    %v108 = vld [vmem:[%s6] sm:$0xff]
    %110 = vset.pattern.permute.xlu0 0
    %111 = vperm.xlu0 %110, %v108
    %v112 = vpop.permute.xlu0 %111
    %v115 = vsel %vm62, %v107, 0
    %117 = vmatpush.msra.mxu0 0.0
    %118 = vmatpush.msra.mxu0 0.0
    %119 = vmatpush.msra.mxu0 0.0
    %120 = vmatpush.msra.mxu0 0.0
    %121 = vmatpush.msra.mxu0 0.0
    %122 = vmatpush.msra.mxu0 0.0
    %123 = vmatpush.msra.mxu0 0.0
    %124 = vmatpush.msra.mxu0 0.0
    %125 = vmatpush.msra.mxu0 0.0
    %126 = vmatpush.msra.mxu0 0.0
    %127 = vmatpush.msra.mxu0 0.0
    %128 = vmatpush.msra.mxu0 0.0
    %129 = vmatpush.msra.mxu0 0.0
    %130 = vmatpush.msra.mxu0 0.0
    %131 = vmatpush.msra.mxu0 0.0
    %132 = vmatpush.msra.mxu0 %v106
    %133 = vmatmul.f32.gmra.mxu0 %v115
    %v134 = vpop.f32.mrf.mxu0
    %v135 = vadd.f32 %v112, %v134
    %136 = vdwg.mxu0
    %137 = vst.msk [vmem:[#allocation2] sm:$0xff] %vm62, %v135
    // Predicated region
    $region30: #{tpu_custom_call.1} parent=1 // pred_check
      _
    $region31: #{tpu_custom_call.1} parent=1 // pred_check_branch
      %139 = sbr.rel (0) target = $region33
    $region32: #{tpu_custom_call.1} parent=1 // pred_region
      %141 = vsyncadd [#allocation3], 0
      %s143 = sshll.u32 [#allocation2], 4
      %s144 = int_to_ptr.vmem [resolvable:$true] %s143
      %s145 = sshll.u32 %s7, 4
      %s146 = int_to_ptr.hbm [resolvable:$true] %s145
      %148 = dma.vmem_to_hbm [thread:$0]  %s144, 128, %s146, [#allocation3]
    $region33: #{tpu_custom_call.1} parent=1 // pred_fallthru
      _
    // Predicated region
    $region34: #{tpu_custom_call.1} parent=1 // pred_check
      _
    $region35: #{tpu_custom_call.1} parent=1 // pred_check_branch
      %150 = sbr.rel (0) target = $region37
    $region36: #{tpu_custom_call.1} parent=1 // pred_region
      %152 = dma.done [#allocation3], 128
    $region37: #{tpu_custom_call.1} parent=1 // pred_fallthru
      _
    %153 = vsyncpa [#allocation3], 1

</llo_original>
